<compile_context>
chip_gen: v7x
topology: tpu7x:2x2x1
jax: 0.10.0
libtpu: 0.0.40
codegen_flags: <defaults>
</compile_context>

<pallas_src>
import jax
import jax.numpy as jnp
from jax.experimental import pallas as pl
from jax.experimental.pallas import tpu as pltpu

BN_EPS = 1e-5
K2 = 16      # conv2 kernel length (hard-coded in the module)
POOL1 = 8    # first AvgPool2d kernel (hard-coded in the module)


# ----------------------------------------------------------------------------
# Fused Pallas kernel: one slab of TB batch elements per grid step
# ----------------------------------------------------------------------------
def _elu(y):
    return jnp.where(y > 0, y, jnp.exp(jnp.minimum(y, 0.0)) - 1.0)


def _convblock_kernel(x_ref, w12_ref, p1_ref, wb_ref, p2_ref, o_ref):
    # x_ref : (1, H+1, TB*W)  slab of TB batch elements; last row == 1.0 (bias carrier)
    # w12   : (M1+1, H+1)     conv1+bn1 ∘ depthwise+bn2 fused; bias column; ones row
    # p1    : (TB*W, TB*W1)   block-diagonal AvgPool2d((1, 8)) matrix
    # wb    : (M1, M1+1)      conv2 + bn3 fused; bias column (consumes ones row)
    # p2    : (TB*W1, TB*Wf)  block-diagonal AvgPool2d((1, poolSize)) matrix
    x = x_ref[0]                                                       # (H+1, TB*W)
    h = jnp.dot(w12_ref[...], x, preferred_element_type=jnp.float32)  # (M1+1, TB*W)
    h = _elu(h)                                                        # ones row stays 1.0
    h = jnp.dot(h, p1_ref[...], preferred_element_type=jnp.float32)   # (M1+1, TB*W1)
    h = jnp.dot(wb_ref[...], h, preferred_element_type=jnp.float32)   # (M1,   TB*W1)
    h = _elu(h)
    o_ref[0] = jnp.dot(h, p2_ref[...], preferred_element_type=jnp.float32)  # (M1, TB*Wf)


# ----------------------------------------------------------------------------
# Wrapper-side weight folding (BN scale, 'same' padding, grouping, pooling)
# ----------------------------------------------------------------------------
def fold_bn(gamma, beta, mean, var):
    scale = gamma / jnp.sqrt(var + BN_EPS)
    shift = beta - mean * scale
    return scale, shift


def conv_same_h_matrix(w, scale, H):
    """Dense matrix for Conv2d with kernel (K, 1), stride 1, padding='same'
    along H, with a per-output-channel scale folded in.
    w: (Cout, Cin, K, 1) -> (Cout*H, Cin*H); rows/cols flattened as c*H + h."""
    Cout, Cin, K, _ = w.shape
    padL = (K - 1) // 2                     # PyTorch 'same' (extra pad on the right)
    ho = jnp.arange(H)[:, None]
    hi = jnp.arange(H)[None, :]
    k = hi - ho + padL                      # (H, H) tap index
    valid = (k >= 0) & (k < K)
    taps = w[:, :, :, 0][:, :, jnp.clip(k, 0, K - 1)]       # (Cout, Cin, H, H)
    taps = jnp.where(valid[None, None], taps, 0.0) * scale[:, None, None, None]
    return jnp.transpose(taps, (0, 2, 1, 3)).reshape(Cout * H, Cin * H)


def depthwise_valid_matrix(w, scale, H, depth_mult):
    """Dense matrix for Conv2d(F1, F2, (Kd, 1), groups=F1) valid conv along H,
    with per-output-channel scale folded in.
    w: (F2, 1, Kd, 1) -> (F2*H2, F1*H), H2 = H - Kd + 1."""
    F2, _, Kd, _ = w.shape
    F1 = F2 // depth_mult
    H2 = H - Kd + 1
    f2 = jnp.arange(F2)[:, None, None]
    h2 = jnp.arange(H2)[None, :, None]
    dh = jnp.arange(Kd)[None, None, :]
    rows = jnp.broadcast_to(f2 * H2 + h2, (F2, H2, Kd)).reshape(-1)
    cols = jnp.broadcast_to((f2 // depth_mult) * H + h2 + dh, (F2, H2, Kd)).reshape(-1)
    vals = jnp.broadcast_to((scale[:, None] * w[:, 0, :, 0])[:, None, :],
                            (F2, H2, Kd)).reshape(-1)
    return jnp.zeros((F2 * H2, F1 * H), jnp.float32).at[rows, cols].set(vals)


def avg_pool_matrix(W, k):
    """(W, W//k) matrix so that  y @ M  == AvgPool2d((1, k)) along the last axis."""
    Wo = W // k
    w = jnp.arange(W)[:, None]
    o = jnp.arange(Wo)[None, :]
    return jnp.where((w // k) == o, 1.0 / k, 0.0).astype(jnp.float32)


def _choose_tb(B, W, target_lanes):
    """Batch elements per grid block so each slab has ~target_lanes lanes."""
    tb = max(1, min(B, max(1, target_lanes // W)))
    while B % tb:
        tb -= 1
    return tb


def convblock_forward(x, P, *, D, poolSize, target_lanes=512):
    """x: (B, 1, H, W) with H == in_chans (EEG channels), W = time."""
    B, Cin, H, W = x.shape
    assert Cin == 1
    x = x.astype(jnp.float32)
    F1 = P["w1"].shape[0]
    F2, _, Kd, _ = P["wd"].shape
    H2 = H - Kd + 1                       # = 1 when H == in_chans (ATCNet usage)
    W1 = W // POOL1
    Wf = W1 // poolSize
    M1 = F2 * H2

    # TODO(synk): the dense conv-as-matrix lowering is O(H^2); if the conv axis
    # is ever the long time axis (H ~ 1000) tile it or use K-tap shifted dots
    # to stay inside v7x's 64 MiB VMEM.
    assert H <= 512, "dense conv-matrix path assumes a short conv axis"

    s1, t1 = fold_bn(*P["bn1"])
    s2, t2 = fold_bn(*P["bn2"])
    s3, t3 = fold_bn(*P["bn3"])

    WA1 = conv_same_h_matrix(P["w1"], s1, H)          # (F1*H, H)
    bA1 = jnp.repeat(t1, H)                           # (F1*H,)
    WA2 = depthwise_valid_matrix(P["wd"], s2, H, D)   # (M1, F1*H)
    bA2 = jnp.repeat(t2, H2)                          # (M1,)
    # Exact linear fold of conv1+bn1 with depthwise+bn2 (no nonlinearity between).
    W12 = WA2 @ WA1                                   # (M1, H)
    b12 = WA2 @ bA1 + bA2                             # (M1,)
    WB = conv_same_h_matrix(P["w2"], s3, H2)          # (M1, M1)
    bB = jnp.repeat(t3, H2)                           # (M1,)

    # Bias folding: a ones row in the input slab passes through ELU and average
    # pooling unchanged, so both BN shifts become plain weight columns.
    W12a = jnp.zeros((M1 + 1, H + 1), jnp.float32)
    W12a = W12a.at[:M1, :H].set(W12).at[:M1, H].set(b12).at[M1, H].set(1.0)
    WBa = jnp.concatenate([WB, bB[:, None]], axis=1)  # (M1, M1+1)

    TB = _choose_tb(B, W, target_lanes)
    G = B // TB
    eye = jnp.eye(TB, dtype=jnp.float32)
    P1 = jnp.kron(eye, avg_pool_matrix(W, POOL1))     # (TB*W,  TB*W1) block-diag
    P2 = jnp.kron(eye, avg_pool_matrix(W1, poolSize)) # (TB*W1, TB*Wf) block-diag

    # (B, 1, H, W) -> G slabs of (H+1, TB*W): batch folded into lanes + ones row.
    xs = x.reshape(G, TB, H, W).transpose(0, 2, 1, 3).reshape(G, H, TB * W)
    xs = jnp.concatenate([xs, jnp.ones((G, 1, TB * W), jnp.float32)], axis=1)

    out = pl.pallas_call(
        _convblock_kernel,
        out_shape=jax.ShapeDtypeStruct((G, M1, TB * Wf), jnp.float32),
        grid=(G,),
        in_specs=[
            pl.BlockSpec((1, H + 1, TB * W), lambda g: (g, 0, 0)),
            pl.BlockSpec(W12a.shape, lambda g: (0, 0)),
            pl.BlockSpec(P1.shape, lambda g: (0, 0)),
            pl.BlockSpec(WBa.shape, lambda g: (0, 0)),
            pl.BlockSpec(P2.shape, lambda g: (0, 0)),
        ],
        out_specs=pl.BlockSpec((1, M1, TB * Wf), lambda g: (g, 0, 0)),
        compiler_params=pltpu.CompilerParams(
            dimension_semantics=("parallel",)),
    )(xs, W12a, P1, WBa, P2)

    # (G, M1, TB*Wf) -> (B, F2, H2, Wf); rows are flattened c*H2 + h2,
    # lanes are flattened tb*Wf + t.
    out = out.reshape(G, F2, H2, TB, Wf).transpose(0, 3, 1, 2, 4)
    return out.reshape(B, F2, H2, Wf)


# ----------------------------------------------------------------------------
# Pure-JAX reference (independent check)
# ----------------------------------------------------------------------------
def ref_forward(x, P, *, D, poolSize):
    F1 = P["w1"].shape[0]

    def conv_same_h(y, w):
        K = w.shape[2]
        padL = (K - 1) // 2
        return jax.lax.conv_general_dilated(
            y, w, window_strides=(1, 1), padding=[(padL, K - 1 - padL), (0, 0)],
            dimension_numbers=("NCHW", "OIHW", "NCHW"))

    def bn(y, p):
        g, b, m, v = p
        s = g / jnp.sqrt(v + BN_EPS)
        return y * s[None, :, None, None] + (b - m * s)[None, :, None, None]

    def avg_pool_w(y, k):
        Bq, C, Hq, Wq = y.shape
        Wo = Wq // k
        return y[..., : Wo * k].reshape(Bq, C, Hq, Wo, k).mean(-1)

    h = bn(conv_same_h(x, P["w1"]), P["bn1"])
    h = jax.lax.conv_general_dilated(
        h, P["wd"], window_strides=(1, 1), padding=[(0, 0), (0, 0)],
        dimension_numbers=("NCHW", "OIHW", "NCHW"), feature_group_count=F1)
    h = bn(h, P["bn2"])
    h = jax.nn.elu(h)
    h = avg_pool_w(h, POOL1)
    h = bn(conv_same_h(h, P["w2"]), P["bn3"])
    h = jax.nn.elu(h)
    h = avg_pool_w(h, poolSize)
    return h


# ----------------------------------------------------------------------------
# Deterministic parameters + run
# ----------------------------------------------------------------------------
def make_params(key, F1, D, in_chans, kernLength):
    F2 = F1 * D
    keys = iter(jax.random.split(key, 16))

    def nrm(shape, scale=0.1):
        return scale * jax.random.normal(next(keys), shape, jnp.float32)

    def bn_params(C):
        gamma = 1.0 + nrm((C,))
        beta = nrm((C,))
        mean = nrm((C,))
        var = jnp.abs(nrm((C,))) + 0.5
        return (gamma, beta, mean, var)

    return {
        "w1": nrm((F1, 1, kernLength, 1)), "bn1": bn_params(F1),
        "wd": nrm((F2, 1, in_chans, 1)),   "bn2": bn_params(F2),
        "w2": nrm((F2, F2, K2, 1)),        "bn3": bn_params(F2),
    }


if __name__ == "__main__":
    # Small config consistent with the module:
    #   ConvBlock(input_layer=..., F1=4, kernLength=16, poolSize=8, D=2,
    #             in_chans=8, dropout=0.1)
    # input x: (B, 1, in_chans, T)
    B, in_chans, T = 8, 8, 128
    F1, D, kernLength, poolSize = 4, 2, 16, 8
    F2 = F1 * D

    key = jax.random.PRNGKey(0)
    kx, kp = jax.random.split(key)
    x = jax.random.normal(kx, (B, 1, in_chans, T), jnp.float32)
    P = make_params(kp, F1, D, in_chans, kernLength)

    out = convblock_forward(x, P, D=D, poolSize=poolSize)
    out = jax.block_until_ready(out)

    expected_shape = (B, F2, 1, T // POOL1 // poolSize)
    assert out.shape == expected_shape, out.shape

    ref = ref_forward(x, P, D=D, poolSize=poolSize)
    max_err = float(jnp.max(jnp.abs(out - ref)))
    assert jnp.allclose(out, ref, atol=5e-4, rtol=5e-4), max_err

    print("KERNEL_OK")
</pallas_src>

<mosaic_0001>
module attributes {stable_mosaic.version = 11 : i64} {
  func.func @_convblock_kernel(%arg0: i32, %arg1: memref<1x9x512xf32, #tpu.memory_space<vmem>>, %arg2: memref<9x9xf32, #tpu.memory_space<vmem>>, %arg3: memref<512x64xf32, #tpu.memory_space<vmem>>, %arg4: memref<8x9xf32, #tpu.memory_space<vmem>>, %arg5: memref<64x8xf32, #tpu.memory_space<vmem>>, %arg6: memref<1x8x8xf32, #tpu.memory_space<vmem>>) attributes {dimension_semantics = [#tpu.dimension_semantics<parallel>], iteration_bounds = array<i64: 2>, scalar_prefetch = 0 : i64, scratch_operands = 0 : i64, tpu.core_type = #tpu.core_type<tc>, window_params = [{transform_indices = @transform_0, window_bounds = array<i64: 1, 9, 512>}, {pipeline_mode = #tpu.pipeline_mode<synchronous>, transform_indices = @transform_1, window_bounds = array<i64: 9, 9>}, {pipeline_mode = #tpu.pipeline_mode<synchronous>, transform_indices = @transform_2, window_bounds = array<i64: 512, 64>}, {pipeline_mode = #tpu.pipeline_mode<synchronous>, transform_indices = @transform_3, window_bounds = array<i64: 8, 9>}, {pipeline_mode = #tpu.pipeline_mode<synchronous>, transform_indices = @transform_4, window_bounds = array<i64: 64, 8>}, {transform_indices = @transform_5, window_bounds = array<i64: 1, 8, 8>}]} {
    %c0 = arith.constant 0 : index
    %c0_0 = arith.constant 0 : index
    %c0_1 = arith.constant 0 : index
    %0 = vector.load %arg1[%c0, %c0_0, %c0_1] : memref<1x9x512xf32, #tpu.memory_space<vmem>>, vector<1x9x512xf32>
    %1 = vector.shape_cast %0 : vector<1x9x512xf32> to vector<9x512xf32>
    %c0_2 = arith.constant 0 : index
    %c0_3 = arith.constant 0 : index
    %2 = vector.load %arg2[%c0_2, %c0_3] : memref<9x9xf32, #tpu.memory_space<vmem>>, vector<9x9xf32>
    %cst = arith.constant dense<0.000000e+00> : vector<9x512xf32>
    %3 = tpu.matmul %2, %1, %cst {dimension_numbers = #tpu.dot_dimension_numbers<[1], [0], [0], [1], [0, 0, 1, 1], [], []>} : vector<9x9xf32>, vector<9x512xf32>, vector<9x512xf32> -> vector<9x512xf32>
    %cst_4 = arith.constant 0.000000e+00 : f32
    %4 = vector.broadcast %cst_4 : f32 to vector<9x512xf32>
    %5 = arith.cmpf ogt, %3, %4 : vector<9x512xf32>
    %cst_5 = arith.constant 0.000000e+00 : f32
    %6 = vector.broadcast %cst_5 : f32 to vector<9x512xf32>
    %7 = arith.minimumf %3, %6 : vector<9x512xf32>
    %8 = math.exp %7 : vector<9x512xf32>
    %cst_6 = arith.constant 1.000000e+00 : f32
    %9 = vector.broadcast %cst_6 : f32 to vector<9x512xf32>
    %10 = arith.subf %8, %9 : vector<9x512xf32>
    %11 = arith.select %5, %3, %10 : vector<9x512xi1>, vector<9x512xf32>
    %c0_7 = arith.constant 0 : index
    %c0_8 = arith.constant 0 : index
    %12 = vector.load %arg3[%c0_7, %c0_8] : memref<512x64xf32, #tpu.memory_space<vmem>>, vector<512x64xf32>
    %cst_9 = arith.constant dense<0.000000e+00> : vector<9x64xf32>
    %13 = tpu.matmul %11, %12, %cst_9 {dimension_numbers = #tpu.dot_dimension_numbers<[1], [0], [0], [1], [0, 0, 1, 1], [], []>} : vector<9x512xf32>, vector<512x64xf32>, vector<9x64xf32> -> vector<9x64xf32>
    %c0_10 = arith.constant 0 : index
    %c0_11 = arith.constant 0 : index
    %14 = vector.load %arg4[%c0_10, %c0_11] : memref<8x9xf32, #tpu.memory_space<vmem>>, vector<8x9xf32>
    %cst_12 = arith.constant dense<0.000000e+00> : vector<8x64xf32>
    %15 = tpu.matmul %14, %13, %cst_12 {dimension_numbers = #tpu.dot_dimension_numbers<[1], [0], [0], [1], [0, 0, 1, 1], [], []>} : vector<8x9xf32>, vector<9x64xf32>, vector<8x64xf32> -> vector<8x64xf32>
    %cst_13 = arith.constant 0.000000e+00 : f32
    %16 = vector.broadcast %cst_13 : f32 to vector<8x64xf32>
    %17 = arith.cmpf ogt, %15, %16 : vector<8x64xf32>
    %cst_14 = arith.constant 0.000000e+00 : f32
    %18 = vector.broadcast %cst_14 : f32 to vector<8x64xf32>
    %19 = arith.minimumf %15, %18 : vector<8x64xf32>
    %20 = math.exp %19 : vector<8x64xf32>
    %cst_15 = arith.constant 1.000000e+00 : f32
    %21 = vector.broadcast %cst_15 : f32 to vector<8x64xf32>
    %22 = arith.subf %20, %21 : vector<8x64xf32>
    %23 = arith.select %17, %15, %22 : vector<8x64xi1>, vector<8x64xf32>
    %c0_16 = arith.constant 0 : index
    %c0_17 = arith.constant 0 : index
    %24 = vector.load %arg5[%c0_16, %c0_17] : memref<64x8xf32, #tpu.memory_space<vmem>>, vector<64x8xf32>
    %cst_18 = arith.constant dense<0.000000e+00> : vector<8x8xf32>
    %25 = tpu.matmul %23, %24, %cst_18 {dimension_numbers = #tpu.dot_dimension_numbers<[1], [0], [0], [1], [0, 0, 1, 1], [], []>} : vector<8x64xf32>, vector<64x8xf32>, vector<8x8xf32> -> vector<8x8xf32>
    %c0_19 = arith.constant 0 : index
    %c0_20 = arith.constant 0 : index
    %c0_21 = arith.constant 0 : index
    %26 = vector.load %arg6[%c0_19, %c0_20, %c0_21] : memref<1x8x8xf32, #tpu.memory_space<vmem>>, vector<1x8x8xf32>
    %27 = vector.shape_cast %26 : vector<1x8x8xf32> to vector<8x8xf32>
    %28 = vector.shape_cast %25 : vector<8x8xf32> to vector<1x8x8xf32>
    tpu.vector_store %arg6[%c0_19, %c0_20, %c0_21], %28 {strides = array<i32>} : memref<1x8x8xf32, #tpu.memory_space<vmem>>, vector<1x8x8xf32>,
    return
  }
  func.func @transform_0(%arg0: i32) -> (i32, i32, i32) {
    %c0_i32 = arith.constant 0 : i32
    %c0_i32_0 = arith.constant 0 : i32
    %c0_i32_1 = arith.constant 0 : i32
    return %arg0, %c0_i32, %c0_i32_0 : i32, i32, i32
  }
  func.func @transform_1(%arg0: i32) -> (i32, i32) {
    %c0_i32 = arith.constant 0 : i32
    %c0_i32_0 = arith.constant 0 : i32
    %c0_i32_1 = arith.constant 0 : i32
    return %c0_i32, %c0_i32_0 : i32, i32
  }
  func.func @transform_2(%arg0: i32) -> (i32, i32) {
    %c0_i32 = arith.constant 0 : i32
    %c0_i32_0 = arith.constant 0 : i32
    %c0_i32_1 = arith.constant 0 : i32
    return %c0_i32, %c0_i32_0 : i32, i32
  }
  func.func @transform_3(%arg0: i32) -> (i32, i32) {
    %c0_i32 = arith.constant 0 : i32
    %c0_i32_0 = arith.constant 0 : i32
    %c0_i32_1 = arith.constant 0 : i32
    return %c0_i32, %c0_i32_0 : i32, i32
  }
  func.func @transform_4(%arg0: i32) -> (i32, i32) {
    %c0_i32 = arith.constant 0 : i32
    %c0_i32_0 = arith.constant 0 : i32
    %c0_i32_1 = arith.constant 0 : i32
    return %c0_i32, %c0_i32_0 : i32, i32
  }
  func.func @transform_5(%arg0: i32) -> (i32, i32, i32) {
    %c0_i32 = arith.constant 0 : i32
    %c0_i32_0 = arith.constant 0 : i32
    %c0_i32_1 = arith.constant 0 : i32
    return %arg0, %c0_i32, %c0_i32_0 : i32, i32, i32
  }
}

</mosaic_0001>

<llo_original>
// kernel: tpu_custom_call.1
$region0: #{tpu_custom_call.1}
  #allocation0 [shape = 'u32[]', space=smem, size = 0x4, offset = 0x4, fixed_abs, tag = 'smem constant byte address 0x4 - core index']
  #allocation1 [shape = 'u32[144,128]{1,0:T(1,128)}', space=vmem, size = 0x12000, scoped, tag = 'internal scratch']
  %s0 = inlined_call_operand.vmem [shape: f32[2,9,512], index: 0, kind: input, shape index: {}]
  %s1 = inlined_call_operand.vmem [shape: f32[9,9], index: 1, kind: input, shape index: {}]
  %s2 = inlined_call_operand.vmem [shape: f32[512,64], index: 2, kind: input, shape index: {}]
  %s3 = inlined_call_operand.vmem [shape: f32[8,9], index: 3, kind: input, shape index: {}]
  %s4 = inlined_call_operand.vmem [shape: f32[64,8], index: 4, kind: input, shape index: {}]
  %s5 = inlined_call_operand.hbm [shape: f32[2,8,8], index: 5, kind: output, shape index: {}]
  %s6 = sld [smem:[#allocation0]]
  $region53: #{tpu_custom_call.1} parent=0
    _
  %s8 = ssub.s32 1, %s6
  %s9 = scalar_select 0, %s8, %s6
  $region1: #{tpu_custom_call.1} parent=0
    #allocation2 [shape = 'u8[8192]{0}', space=vmem, size = 0x2000, scoped, tag = 'output window, operand 0']
    #allocation3 [shape = 's32[2]{0}', space=sflag, size = 0x8, scoped, tag = 'scoped memory for tpu_custom_call.1']
    %10 = vsyncpa [#allocation3], 0
    %s11 = scalar_lea.sflag [#allocation3], 1
    %12 = vsyncpa %s11, 0
    loop: start=0, step=1, limit=4
    $region2: #{tpu_custom_call.1} parent=1 // loop_pre_header
      _
    $region3: #{tpu_custom_call.1} parent=1 // loop_header
      %s14 = sphi 0, %s18
      %p15 = scmp.ge.s32.totalorder %s14, 4
      %s24 = sphi 0, %s26
      %s27 = sphi 0, %s24
      %s28 = sphi 0, %s27
      %s44 = sphi 0, %s28
      %s48 = sphi 0, %s48
      %s50 = sphi 0, %s48
      %s51 = sphi 0, %s50
      %s65 = sphi 0, %s51
      %s69 = sphi 0, %s69
      %s71 = sphi 0, %s69
      %s72 = sphi 0, %s71
      %s86 = sphi 0, %s72
      %s90 = sphi 0, %s90
      %s92 = sphi 0, %s90
      %s93 = sphi 0, %s92
      %s107 = sphi 0, %s93
      %s111 = sphi 0, %s111
      %s113 = sphi 0, %s111
      %s114 = sphi 0, %s113
      %s128 = sphi 0, %s114
      %s134 = sphi 0, %s136
      %s137 = sphi 0, %s134
      %s138 = sphi 0, %s137
      %s154 = sphi 0, %s138
    $region4: #{tpu_custom_call.1} parent=1 // loop_header_branch
      %17 = sbr.rel (%p15) target = $region8
    $region5: #{tpu_custom_call.1} parent=1 // loop_body
      %s19 = ssub.s32 %s14, 1
      %s20 = ssub.s32 %s14, 2
      %s21 = sadd.s32 %s14, 1
      %s22 = ssub.s32 %s14, %s21
      %p23 = scmp.eq.s32.totalorder %s22, 0
      %s25 = sadd.s32 %s24, 1
      %s26 = scalar_select %p23, %s24, %s25
      %p29 = pneg %p23
      %p30 = scmp.eq.s32.totalorder %s14, 1
      %p31 = por %p29, %p30
      %p32 = scmp.ne.s32.totalorder %s24, %s27
      %p33 = scmp.eq.s32.totalorder %s14, 0
      %p34 = por %p32, %p33
      %p35 = scmp.ne.s32.totalorder %s24, %s27
      %p36 = scmp.eq.s32.totalorder %s19, 1
      %p37 = por %p35, %p36
      %p38 = scmp.ne.s32.totalorder %s27, %s28
      %p39 = scmp.eq.s32.totalorder %s19, 0
      %p40 = por %p38, %p39
      %p41 = scmp.ne.s32.totalorder %s27, %s28
      %p42 = scmp.eq.s32.totalorder %s20, 1
      %p43 = por %p41, %p42
      %p45 = scmp.ne.s32.totalorder %s28, %s44
      %p46 = scmp.eq.s32.totalorder %s20, 0
      %p47 = por %p45, %p46
      %s49 = sadd.s32 %s48, 1
      %p52 = scmp.eq.s32.totalorder %s14, 1
      %p53 = scmp.ne.s32.totalorder %s48, %s50
      %p54 = scmp.eq.s32.totalorder %s14, 0
      %p55 = por %p53, %p54
      %p56 = scmp.ne.s32.totalorder %s48, %s50
      %p57 = scmp.eq.s32.totalorder %s19, 1
      %p58 = por %p56, %p57
      %p59 = scmp.ne.s32.totalorder %s50, %s51
      %p60 = scmp.eq.s32.totalorder %s19, 0
      %p61 = por %p59, %p60
      %p62 = scmp.ne.s32.totalorder %s50, %s51
      %p63 = scmp.eq.s32.totalorder %s20, 1
      %p64 = por %p62, %p63
      %p66 = scmp.ne.s32.totalorder %s51, %s65
      %p67 = scmp.eq.s32.totalorder %s20, 0
      %p68 = por %p66, %p67
      %s70 = sadd.s32 %s69, 1
      %p73 = scmp.eq.s32.totalorder %s14, 1
      %p74 = scmp.ne.s32.totalorder %s69, %s71
      %p75 = scmp.eq.s32.totalorder %s14, 0
      %p76 = por %p74, %p75
      %p77 = scmp.ne.s32.totalorder %s69, %s71
      %p78 = scmp.eq.s32.totalorder %s19, 1
      %p79 = por %p77, %p78
      %p80 = scmp.ne.s32.totalorder %s71, %s72
      %p81 = scmp.eq.s32.totalorder %s19, 0
      %p82 = por %p80, %p81
      %p83 = scmp.ne.s32.totalorder %s71, %s72
      %p84 = scmp.eq.s32.totalorder %s20, 1
      %p85 = por %p83, %p84
      %p87 = scmp.ne.s32.totalorder %s72, %s86
      %p88 = scmp.eq.s32.totalorder %s20, 0
      %p89 = por %p87, %p88
      %s91 = sadd.s32 %s90, 1
      %p94 = scmp.eq.s32.totalorder %s14, 1
      %p95 = scmp.ne.s32.totalorder %s90, %s92
      %p96 = scmp.eq.s32.totalorder %s14, 0
      %p97 = por %p95, %p96
      %p98 = scmp.ne.s32.totalorder %s90, %s92
      %p99 = scmp.eq.s32.totalorder %s19, 1
      %p100 = por %p98, %p99
      %p101 = scmp.ne.s32.totalorder %s92, %s93
      %p102 = scmp.eq.s32.totalorder %s19, 0
      %p103 = por %p101, %p102
      %p104 = scmp.ne.s32.totalorder %s92, %s93
      %p105 = scmp.eq.s32.totalorder %s20, 1
      %p106 = por %p104, %p105
      %p108 = scmp.ne.s32.totalorder %s93, %s107
      %p109 = scmp.eq.s32.totalorder %s20, 0
      %p110 = por %p108, %p109
      %s112 = sadd.s32 %s111, 1
      %p115 = scmp.eq.s32.totalorder %s14, 1
      %p116 = scmp.ne.s32.totalorder %s111, %s113
      %p117 = scmp.eq.s32.totalorder %s14, 0
      %p118 = por %p116, %p117
      %p119 = scmp.ne.s32.totalorder %s111, %s113
      %p120 = scmp.eq.s32.totalorder %s19, 1
      %p121 = por %p119, %p120
      %p122 = scmp.ne.s32.totalorder %s113, %s114
      %p123 = scmp.eq.s32.totalorder %s19, 0
      %p124 = por %p122, %p123
      %p125 = scmp.ne.s32.totalorder %s113, %s114
      %p126 = scmp.eq.s32.totalorder %s20, 1
      %p127 = por %p125, %p126
      %p129 = scmp.ne.s32.totalorder %s114, %s128
      %p130 = scmp.eq.s32.totalorder %s20, 0
      %p131 = por %p129, %p130
      %s132 = ssub.s32 %s14, %s21
      %p133 = scmp.eq.s32.totalorder %s132, 0
      %s135 = sadd.s32 %s134, 1
      %s136 = scalar_select %p133, %s134, %s135
      %p139 = pneg %p133
      %p140 = scmp.eq.s32.totalorder %s14, 1
      %p141 = por %p139, %p140
      %p142 = scmp.ne.s32.totalorder %s134, %s137
      %p143 = scmp.eq.s32.totalorder %s14, 0
      %p144 = por %p142, %p143
      %p145 = scmp.ne.s32.totalorder %s134, %s137
      %p146 = scmp.eq.s32.totalorder %s19, 1
      %p147 = por %p145, %p146
      %p148 = scmp.ne.s32.totalorder %s137, %s138
      %p149 = scmp.eq.s32.totalorder %s19, 0
      %p150 = por %p148, %p149
      %p151 = scmp.ne.s32.totalorder %s137, %s138
      %p152 = scmp.eq.s32.totalorder %s20, 1
      %p153 = por %p151, %p152
      %p155 = scmp.ne.s32.totalorder %s138, %s154
      %p156 = scmp.eq.s32.totalorder %s20, 0
      %p157 = por %p155, %p156
      %p158 = scmp.le.s32.totalorder 1, %s14
      %p159 = scmp.lt.s32.totalorder %s14, 3
      %p160 = pnand %p158, %p159
      %p161 = pneg %p160
      // Predicated region
      $region9: #{tpu_custom_call.1} parent=5 // pred_check
        _
      $region10: #{tpu_custom_call.1} parent=5 // pred_check_branch
        %163 = sbr.rel (%p160) target = $region12
      $region11: #{tpu_custom_call.1} parent=5 // pred_region
        %s164 = ssub.s32 %s14, 1
        // Predicated region
        $region13: #{tpu_custom_call.1} parent=11 // pred_check
          %p165 = pneg %p61
        $region14: #{tpu_custom_call.1} parent=11 // pred_check_branch
          %167 = sbr.rel (%p165) target = $region16
        $region15: #{tpu_custom_call.1} parent=11 // pred_region
          _
        $region16: #{tpu_custom_call.1} parent=11 // pred_fallthru
          _
        // Predicated region
        $region17: #{tpu_custom_call.1} parent=11 // pred_check
          %p168 = pneg %p82
        $region18: #{tpu_custom_call.1} parent=11 // pred_check_branch
          %170 = sbr.rel (%p168) target = $region20
        $region19: #{tpu_custom_call.1} parent=11 // pred_region
          _
        $region20: #{tpu_custom_call.1} parent=11 // pred_fallthru
          _
        // Predicated region
        $region21: #{tpu_custom_call.1} parent=11 // pred_check
          %p171 = pneg %p103
        $region22: #{tpu_custom_call.1} parent=11 // pred_check_branch
          %173 = sbr.rel (%p171) target = $region24
        $region23: #{tpu_custom_call.1} parent=11 // pred_region
          _
        $region24: #{tpu_custom_call.1} parent=11 // pred_fallthru
          _
        // Predicated region
        $region25: #{tpu_custom_call.1} parent=11 // pred_check
          %p174 = pneg %p124
        $region26: #{tpu_custom_call.1} parent=11 // pred_check_branch
          %176 = sbr.rel (%p174) target = $region28
        $region27: #{tpu_custom_call.1} parent=11 // pred_region
          _
        $region28: #{tpu_custom_call.1} parent=11 // pred_fallthru
          _
      $region12: #{tpu_custom_call.1} parent=5 // pred_fallthru
        _
      %p177 = scmp.lt.s32.totalorder %s14, 2
      // Predicated region
      $region29: #{tpu_custom_call.1} parent=5 // pred_check
        %p178 = pneg %p177
      $region30: #{tpu_custom_call.1} parent=5 // pred_check_branch
        %180 = sbr.rel (%p178) target = $region32
      $region31: #{tpu_custom_call.1} parent=5 // pred_region
        // Predicated region
        $region33: #{tpu_custom_call.1} parent=31 // pred_check
          %p181 = pneg %p34
        $region34: #{tpu_custom_call.1} parent=31 // pred_check_branch
          %183 = sbr.rel (%p181) target = $region36
        $region35: #{tpu_custom_call.1} parent=31 // pred_region
          %p184 = scmp.lt.s32.totalorder %s14, 1
          %s185 = scalar_select %p184, %s14, 1
          %s186 = smul.addr %s185, 8
          %s187 = smul.addr %s186, 8
          %s188 = scalar_lea.vmem %s0, %s187
        $region36: #{tpu_custom_call.1} parent=31 // pred_fallthru
          _
      $region32: #{tpu_custom_call.1} parent=5 // pred_fallthru
        _
      %p189 = scmp.le.s32.totalorder 1, %s14
      %p190 = scmp.lt.s32.totalorder %s14, 3
      %p191 = pnand %p189, %p190
      %p192 = pneg %p191
      // Predicated region
      $region37: #{tpu_custom_call.1} parent=5 // pred_check
        _
      $region38: #{tpu_custom_call.1} parent=5 // pred_check_branch
        %194 = sbr.rel (%p191) target = $region40
      $region39: #{tpu_custom_call.1} parent=5 // pred_region
        %s195 = ssub.s32 %s14, 1
        %p196 = scmp.lt.s32.totalorder %s19, 1
        %s197 = scalar_select %p196, %s19, 1
        %s198 = smul.addr %s197, 8
        %s199 = smul.addr %s198, 8
        %s200 = scalar_lea.vmem %s0, %s199
        %p201 = pneg %p40
        %p202 = pneg %p37
        %p203 = pneg %p61
        %p204 = pneg %p58
        %p205 = pneg %p82
        %p206 = pneg %p79
        %p207 = pneg %p103
        %p208 = pneg %p100
        %p209 = pneg %p124
        %p210 = pneg %p121
        %p211 = pneg %p150
        %p212 = pneg %p147
        %s213 = sand.u32 %s137, 1
        %s214 = scalar_lea.sflag [#allocation3], %s213
        %s215 = sand.u32 %s137, 1
        %s216 = smul.addr %s215, 8
        %s217 = scalar_lea.vmem [#allocation2], %s216
        %p218 = scmp.lt.s32.totalorder %s19, 1
        %s219 = scalar_select %p218, %s19, 1
        %s220 = smul.addr %s219, 8
        %s221 = smul.addr %s220, 8
        %s222 = scalar_lea.vmem %s0, %s221
        %v223 = vld [vmem:[%s222] sm:$0xff]
        %v224 = vld [vmem:[%s222 + $0x8] sm:$0xff]
        %v225 = vld [vmem:[%s222 + $0x10] sm:$0xff]
        %v226 = vld [vmem:[%s222 + $0x18] sm:$0xff]
        %v227 = vld [vmem:[%s222 + $0x20] sm:$0x1]
        %v228 = vld [vmem:[%s222 + $0x28] sm:$0x1]
        %v229 = vld [vmem:[%s222 + $0x30] sm:$0x1]
        %v230 = vld [vmem:[%s222 + $0x38] sm:$0x1]
        %v231 = vld [vmem:[%s1] sm:$0xff]
        %v232 = vld [vmem:[%s1 + $0x8] sm:$0x1]
        %vm233 = vcmask 72704
        %v235 = vsel %vm233, %v231, 0
        %v238 = vsel %vm233, %v232, 0
        %vm240 = vcmask 1040384
        %v242 = vsel %vm240, %v227, 0
        %v245 = vsel %vm240, %v228, 0
        %v248 = vsel %vm240, %v229, 0
        %v251 = vsel %vm240, %v230, 0
        %253 = vmatprep.subr.mxu0 %v224
        %254 = vmatpush1.msra.mxu0 %v223
        %255 = vmatprep.subr.mxu0 %v245
        %256 = vmatpush1.msra.mxu0 %v242
        %257 = vmatprep.subr.mxu0 0.0
        %258 = vmatpush1.msra.mxu0 0.0
        %259 = vmatprep.subr.mxu0 0.0
        %260 = vmatpush1.msra.mxu0 0.0
        %261 = vmatprep.subr.mxu0 0.0
        %262 = vmatpush1.msra.mxu0 0.0
        %263 = vmatprep.subr.mxu0 0.0
        %264 = vmatpush1.msra.mxu0 0.0
        %265 = vmatprep.subr.mxu0 0.0
        %266 = vmatpush1.msra.mxu0 0.0
        %267 = vmatprep.subr.mxu0 0.0
        %268 = vmatpush1.msra.mxu0 0.0
        %269 = vmatprep.subr.mxu0 0.0
        %270 = vmatpush1.msra.mxu0 0.0
        %271 = vmatprep.subr.mxu0 0.0
        %272 = vmatpush1.msra.mxu0 0.0
        %273 = vmatprep.subr.mxu0 0.0
        %274 = vmatpush1.msra.mxu0 0.0
        %275 = vmatprep.subr.mxu0 0.0
        %276 = vmatpush1.msra.mxu0 0.0
        %277 = vmatprep.subr.mxu0 0.0
        %278 = vmatpush1.msra.mxu0 0.0
        %279 = vmatprep.subr.mxu0 0.0
        %280 = vmatpush1.msra.mxu0 0.0
        %281 = vmatprep.subr.mxu0 0.0
        %282 = vmatpush1.msra.mxu0 0.0
        %283 = vmatprep.subr.mxu0 0.0
        %284 = vmatpush1.msra.mxu0 0.0
        %285 = vmatprep.subr.mxu0 0.0
        %286 = vmatpush1.msra.mxu0 0.0
        %287 = vmatprep.subr.mxu0 0.0
        %288 = vmatpush1.msra.mxu0 0.0
        %289 = vmatprep.subr.mxu0 0.0
        %290 = vmatpush1.msra.mxu0 0.0
        %291 = vmatprep.subr.mxu0 0.0
        %292 = vmatpush1.msra.mxu0 0.0
        %293 = vmatprep.subr.mxu0 0.0
        %294 = vmatpush1.msra.mxu0 0.0
        %295 = vmatprep.subr.mxu0 0.0
        %296 = vmatpush1.msra.mxu0 0.0
        %297 = vmatprep.subr.mxu0 0.0
        %298 = vmatpush1.msra.mxu0 0.0
        %299 = vmatprep.subr.mxu0 0.0
        %300 = vmatpush1.msra.mxu0 0.0
        %301 = vmatprep.subr.mxu0 0.0
        %302 = vmatpush1.msra.mxu0 0.0
        %303 = vmatprep.subr.mxu0 0.0
        %304 = vmatpush1.msra.mxu0 0.0
        %305 = vmatprep.subr.mxu0 0.0
        %306 = vmatpush1.msra.mxu0 0.0
        %307 = vmatprep.subr.mxu0 0.0
        %308 = vmatpush1.msra.mxu0 0.0
        %309 = vmatprep.subr.mxu0 0.0
        %310 = vmatpush1.msra.mxu0 0.0
        %311 = vmatprep.subr.mxu0 0.0
        %312 = vmatpush1.msra.mxu0 0.0
        %313 = vmatprep.subr.mxu0 0.0
        %314 = vmatpush1.msra.mxu0 0.0
        %315 = vmatprep.subr.mxu0 0.0
        %316 = vmatpush1.msra.mxu0 0.0
        %317 = vmatprep.mubr.f32.mxu0 0.0
        %318 = vmatmul.mubr.f32.gmra.mrb[0].mxu0 %v235
        %v319 = vpop.f32.mrb[0].mxu0
        %v320 = vadd.f32 0.0, %v319
        %v321 = vpop.f32.mrb[0].mxu0
        %v322 = vadd.f32 0.0, %v321
        %323 = vmatprep.mubr.f32.mxu0 0.0
        %324 = vmatmul.mubr.f32.gmra.mrb[0].mxu0 %v238
        %v325 = vpop.f32.mrb[0].mxu0
        %v326 = vadd.f32 0.0, %v325
        %v327 = vpop.f32.mrb[0].mxu0
        %v328 = vadd.f32 0.0, %v327
        %329 = vdwg.mxu0
        %330 = vmatprep.subr.mxu0 %v226
        %331 = vmatpush1.msra.mxu0 %v225
        %332 = vmatprep.subr.mxu0 %v251
        %333 = vmatpush1.msra.mxu0 %v248
        %334 = vmatprep.subr.mxu0 0.0
        %335 = vmatpush1.msra.mxu0 0.0
        %336 = vmatprep.subr.mxu0 0.0
        %337 = vmatpush1.msra.mxu0 0.0
        %338 = vmatprep.subr.mxu0 0.0
        %339 = vmatpush1.msra.mxu0 0.0
        %340 = vmatprep.subr.mxu0 0.0
        %341 = vmatpush1.msra.mxu0 0.0
        %342 = vmatprep.subr.mxu0 0.0
        %343 = vmatpush1.msra.mxu0 0.0
        %344 = vmatprep.subr.mxu0 0.0
        %345 = vmatpush1.msra.mxu0 0.0
        %346 = vmatprep.subr.mxu0 0.0
        %347 = vmatpush1.msra.mxu0 0.0
        %348 = vmatprep.subr.mxu0 0.0
        %349 = vmatpush1.msra.mxu0 0.0
        %350 = vmatprep.subr.mxu0 0.0
        %351 = vmatpush1.msra.mxu0 0.0
        %352 = vmatprep.subr.mxu0 0.0
        %353 = vmatpush1.msra.mxu0 0.0
        %354 = vmatprep.subr.mxu0 0.0
        %355 = vmatpush1.msra.mxu0 0.0
        %356 = vmatprep.subr.mxu0 0.0
        %357 = vmatpush1.msra.mxu0 0.0
        %358 = vmatprep.subr.mxu0 0.0
        %359 = vmatpush1.msra.mxu0 0.0
        %360 = vmatprep.subr.mxu0 0.0
        %361 = vmatpush1.msra.mxu0 0.0
        %362 = vmatprep.subr.mxu0 0.0
        %363 = vmatpush1.msra.mxu0 0.0
        %364 = vmatprep.subr.mxu0 0.0
        %365 = vmatpush1.msra.mxu0 0.0
        %366 = vmatprep.subr.mxu0 0.0
        %367 = vmatpush1.msra.mxu0 0.0
        %368 = vmatprep.subr.mxu0 0.0
        %369 = vmatpush1.msra.mxu0 0.0
        %370 = vmatprep.subr.mxu0 0.0
        %371 = vmatpush1.msra.mxu0 0.0
        %372 = vmatprep.subr.mxu0 0.0
        %373 = vmatpush1.msra.mxu0 0.0
        %374 = vmatprep.subr.mxu0 0.0
        %375 = vmatpush1.msra.mxu0 0.0
        %376 = vmatprep.subr.mxu0 0.0
        %377 = vmatpush1.msra.mxu0 0.0
        %378 = vmatprep.subr.mxu0 0.0
        %379 = vmatpush1.msra.mxu0 0.0
        %380 = vmatprep.subr.mxu0 0.0
        %381 = vmatpush1.msra.mxu0 0.0
        %382 = vmatprep.subr.mxu0 0.0
        %383 = vmatpush1.msra.mxu0 0.0
        %384 = vmatprep.subr.mxu0 0.0
        %385 = vmatpush1.msra.mxu0 0.0
        %386 = vmatprep.subr.mxu0 0.0
        %387 = vmatpush1.msra.mxu0 0.0
        %388 = vmatprep.subr.mxu0 0.0
        %389 = vmatpush1.msra.mxu0 0.0
        %390 = vmatprep.subr.mxu0 0.0
        %391 = vmatpush1.msra.mxu0 0.0
        %392 = vmatprep.subr.mxu0 0.0
        %393 = vmatpush1.msra.mxu0 0.0
        %394 = vmatprep.mubr.f32.mxu0 0.0
        %395 = vmatmul.mubr.f32.gmra.mrb[0].mxu0 %v235
        %v396 = vpop.f32.mrb[0].mxu0
        %v397 = vadd.f32 0.0, %v396
        %v398 = vpop.f32.mrb[0].mxu0
        %v399 = vadd.f32 0.0, %v398
        %400 = vmatprep.mubr.f32.mxu0 0.0
        %401 = vmatmul.mubr.f32.gmra.mrb[0].mxu0 %v238
        %v402 = vpop.f32.mrb[0].mxu0
        %v403 = vadd.f32 0.0, %v402
        %v404 = vpop.f32.mrb[0].mxu0
        %v405 = vadd.f32 0.0, %v404
        %406 = vdwg.mxu0
        %vm407 = vcmp.gt.f32.partialorder %v320, 0.0
        %vm408 = vcmp.gt.f32.partialorder %v322, 0.0
        %vm409 = vcmp.gt.f32.partialorder %v397, 0.0
        %vm410 = vcmp.gt.f32.partialorder %v399, 0.0
        %vm411 = vcmp.gt.f32.partialorder %v326, 0.0
        %vm412 = vcmp.gt.f32.partialorder %v328, 0.0
        %vm413 = vcmp.gt.f32.partialorder %v403, 0.0
        %vm414 = vcmp.gt.f32.partialorder %v405, 0.0
        %v415 = vmin.f32 %v320, 0.0
        %v416 = vmin.f32 %v322, 0.0
        %v417 = vmin.f32 %v397, 0.0
        %v418 = vmin.f32 %v399, 0.0
        %v419 = vmin.f32 %v326, 0.0
        %v420 = vmin.f32 %v328, 0.0
        %v421 = vmin.f32 %v403, 0.0
        %v422 = vmin.f32 %v405, 0.0
        %v423 = vmul.f32 %v415, 1.442695
        %v424 = vpow.pop %v423
        %v425 = vmul.f32 %v416, 1.442695
        %v426 = vpow.pop %v425
        %v427 = vmul.f32 %v417, 1.442695
        %v428 = vpow.pop %v427
        %v429 = vmul.f32 %v418, 1.442695
        %v430 = vpow.pop %v429
        %v431 = vmul.f32 %v419, 1.442695
        %v432 = vpow.pop %v431
        %v433 = vmul.f32 %v420, 1.442695
        %v434 = vpow.pop %v433
        %v435 = vmul.f32 %v421, 1.442695
        %v436 = vpow.pop %v435
        %v437 = vmul.f32 %v422, 1.442695
        %v438 = vpow.pop %v437
        %v439 = vsub.f32 %v424, 1.0
        %v440 = vsub.f32 %v426, 1.0
        %v441 = vsub.f32 %v428, 1.0
        %v442 = vsub.f32 %v430, 1.0
        %v443 = vsub.f32 %v432, 1.0
        %v444 = vsub.f32 %v434, 1.0
        %v445 = vsub.f32 %v436, 1.0
        %v446 = vsub.f32 %v438, 1.0
        %v447 = vsel %vm407, %v320, %v439
        %v448 = vsel %vm408, %v322, %v440
        %v449 = vsel %vm409, %v397, %v441
        %v450 = vsel %vm410, %v399, %v442
        %v451 = vsel %vm411, %v326, %v443
        %v452 = vsel %vm412, %v328, %v444
        %v453 = vsel %vm413, %v403, %v445
        %v454 = vsel %vm414, %v405, %v446
        %v455 = vld [vmem:[%s2] sm:$0xff]
        %v456 = vld [vmem:[%s2 + $0x8] sm:$0xff]
        %v457 = vld [vmem:[%s2 + $0x10] sm:$0xff]
        %v458 = vld [vmem:[%s2 + $0x18] sm:$0xff]
        %v459 = vld [vmem:[%s2 + $0x20] sm:$0xff]
        %v460 = vld [vmem:[%s2 + $0x28] sm:$0xff]
        %v461 = vld [vmem:[%s2 + $0x30] sm:$0xff]
        %v462 = vld [vmem:[%s2 + $0x38] sm:$0xff]
        %v463 = vld [vmem:[%s2 + $0x40] sm:$0xff]
        %v464 = vld [vmem:[%s2 + $0x48] sm:$0xff]
        %v465 = vld [vmem:[%s2 + $0x50] sm:$0xff]
        %v466 = vld [vmem:[%s2 + $0x58] sm:$0xff]
        %v467 = vld [vmem:[%s2 + $0x60] sm:$0xff]
        %v468 = vld [vmem:[%s2 + $0x68] sm:$0xff]
        %v469 = vld [vmem:[%s2 + $0x70] sm:$0xff]
        %v470 = vld [vmem:[%s2 + $0x78] sm:$0xff]
        %v471 = vld [vmem:[%s2 + $0x80] sm:$0xff]
        %v472 = vld [vmem:[%s2 + $0x88] sm:$0xff]
        %v473 = vld [vmem:[%s2 + $0x90] sm:$0xff]
        %v474 = vld [vmem:[%s2 + $0x98] sm:$0xff]
        %v475 = vld [vmem:[%s2 + $0xa0] sm:$0xff]
        %v476 = vld [vmem:[%s2 + $0xa8] sm:$0xff]
        %v477 = vld [vmem:[%s2 + $0xb0] sm:$0xff]
        %v478 = vld [vmem:[%s2 + $0xb8] sm:$0xff]
        %v479 = vld [vmem:[%s2 + $0xc0] sm:$0xff]
        %v480 = vld [vmem:[%s2 + $0xc8] sm:$0xff]
        %v481 = vld [vmem:[%s2 + $0xd0] sm:$0xff]
        %v482 = vld [vmem:[%s2 + $0xd8] sm:$0xff]
        %v483 = vld [vmem:[%s2 + $0xe0] sm:$0xff]
        %v484 = vld [vmem:[%s2 + $0xe8] sm:$0xff]
        %v485 = vld [vmem:[%s2 + $0xf0] sm:$0xff]
        %v486 = vld [vmem:[%s2 + $0xf8] sm:$0xff]
        %v487 = vld [vmem:[%s2 + $0x100] sm:$0xff]
        %v488 = vld [vmem:[%s2 + $0x108] sm:$0xff]
        %v489 = vld [vmem:[%s2 + $0x110] sm:$0xff]
        %v490 = vld [vmem:[%s2 + $0x118] sm:$0xff]
        %v491 = vld [vmem:[%s2 + $0x120] sm:$0xff]
        %v492 = vld [vmem:[%s2 + $0x128] sm:$0xff]
        %v493 = vld [vmem:[%s2 + $0x130] sm:$0xff]
        %v494 = vld [vmem:[%s2 + $0x138] sm:$0xff]
        %v495 = vld [vmem:[%s2 + $0x140] sm:$0xff]
        %v496 = vld [vmem:[%s2 + $0x148] sm:$0xff]
        %v497 = vld [vmem:[%s2 + $0x150] sm:$0xff]
        %v498 = vld [vmem:[%s2 + $0x158] sm:$0xff]
        %v499 = vld [vmem:[%s2 + $0x160] sm:$0xff]
        %v500 = vld [vmem:[%s2 + $0x168] sm:$0xff]
        %v501 = vld [vmem:[%s2 + $0x170] sm:$0xff]
        %v502 = vld [vmem:[%s2 + $0x178] sm:$0xff]
        %v503 = vld [vmem:[%s2 + $0x180] sm:$0xff]
        %v504 = vld [vmem:[%s2 + $0x188] sm:$0xff]
        %v505 = vld [vmem:[%s2 + $0x190] sm:$0xff]
        %v506 = vld [vmem:[%s2 + $0x198] sm:$0xff]
        %v507 = vld [vmem:[%s2 + $0x1a0] sm:$0xff]
        %v508 = vld [vmem:[%s2 + $0x1a8] sm:$0xff]
        %v509 = vld [vmem:[%s2 + $0x1b0] sm:$0xff]
        %v510 = vld [vmem:[%s2 + $0x1b8] sm:$0xff]
        %v511 = vld [vmem:[%s2 + $0x1c0] sm:$0xff]
        %v512 = vld [vmem:[%s2 + $0x1c8] sm:$0xff]
        %v513 = vld [vmem:[%s2 + $0x1d0] sm:$0xff]
        %v514 = vld [vmem:[%s2 + $0x1d8] sm:$0xff]
        %v515 = vld [vmem:[%s2 + $0x1e0] sm:$0xff]
        %v516 = vld [vmem:[%s2 + $0x1e8] sm:$0xff]
        %v517 = vld [vmem:[%s2 + $0x1f0] sm:$0xff]
        %v518 = vld [vmem:[%s2 + $0x1f8] sm:$0xff]
        %519 = vmatprep.subr.mxu0 0.0
        %520 = vmatpush1.msra.mxu0 %v455
        %521 = vmatprep.subr.mxu0 0.0
        %522 = vmatpush1.msra.mxu0 %v456
        %523 = vmatprep.subr.mxu0 0.0
        %524 = vmatpush1.msra.mxu0 %v457
        %525 = vmatprep.subr.mxu0 0.0
        %526 = vmatpush1.msra.mxu0 %v458
        %527 = vmatprep.subr.mxu0 0.0
        %528 = vmatpush1.msra.mxu0 %v459
        %529 = vmatprep.subr.mxu0 0.0
        %530 = vmatpush1.msra.mxu0 %v460
        %531 = vmatprep.subr.mxu0 0.0
        %532 = vmatpush1.msra.mxu0 %v461
        %533 = vmatprep.subr.mxu0 0.0
        %534 = vmatpush1.msra.mxu0 %v462
        %535 = vmatprep.subr.mxu0 0.0
        %536 = vmatpush1.msra.mxu0 %v463
        %537 = vmatprep.subr.mxu0 0.0
        %538 = vmatpush1.msra.mxu0 %v464
        %539 = vmatprep.subr.mxu0 0.0
        %540 = vmatpush1.msra.mxu0 %v465
        %541 = vmatprep.subr.mxu0 0.0
        %542 = vmatpush1.msra.mxu0 %v466
        %543 = vmatprep.subr.mxu0 0.0
        %544 = vmatpush1.msra.mxu0 %v467
        %545 = vmatprep.subr.mxu0 0.0
        %546 = vmatpush1.msra.mxu0 %v468
        %547 = vmatprep.subr.mxu0 0.0
        %548 = vmatpush1.msra.mxu0 %v469
        %549 = vmatprep.subr.mxu0 0.0
        %550 = vmatpush1.msra.mxu0 %v470
        %551 = vmatprep.subr.mxu0 0.0
        %552 = vmatpush1.msra.mxu0 %v471
        %553 = vmatprep.subr.mxu0 0.0
        %554 = vmatpush1.msra.mxu0 %v472
        %555 = vmatprep.subr.mxu0 0.0
        %556 = vmatpush1.msra.mxu0 %v473
        %557 = vmatprep.subr.mxu0 0.0
        %558 = vmatpush1.msra.mxu0 %v474
        %559 = vmatprep.subr.mxu0 0.0
        %560 = vmatpush1.msra.mxu0 %v475
        %561 = vmatprep.subr.mxu0 0.0
        %562 = vmatpush1.msra.mxu0 %v476
        %563 = vmatprep.subr.mxu0 0.0
        %564 = vmatpush1.msra.mxu0 %v477
        %565 = vmatprep.subr.mxu0 0.0
        %566 = vmatpush1.msra.mxu0 %v478
        %567 = vmatprep.subr.mxu0 0.0
        %568 = vmatpush1.msra.mxu0 %v479
        %569 = vmatprep.subr.mxu0 0.0
        %570 = vmatpush1.msra.mxu0 %v480
        %571 = vmatprep.subr.mxu0 0.0
        %572 = vmatpush1.msra.mxu0 %v481
        %573 = vmatprep.subr.mxu0 0.0
        %574 = vmatpush1.msra.mxu0 %v482
        %575 = vmatprep.subr.mxu0 0.0
        %576 = vmatpush1.msra.mxu0 %v483
        %577 = vmatprep.subr.mxu0 0.0
        %578 = vmatpush1.msra.mxu0 %v484
        %579 = vmatprep.subr.mxu0 0.0
        %580 = vmatpush1.msra.mxu0 %v485
        %581 = vmatprep.subr.mxu0 0.0
        %582 = vmatpush1.msra.mxu0 %v486
        %583 = vmatprep.mubr.f32.mxu0 %v448
        %584 = vmatmul.mubr.f32.gmra.mrb[0].mxu0 %v447
        %v585 = vpop.f32.mrb[0].mxu0
        %v586 = vadd.f32 0.0, %v585
        %v587 = vpop.f32.mrb[0].mxu0
        %588 = vmatprep.mubr.f32.mxu0 %v452
        %589 = vmatmul.mubr.f32.gmra.mrb[0].mxu0 %v451
        %v590 = vpop.f32.mrb[0].mxu0
        %v591 = vadd.f32 0.0, %v590
        %v592 = vpop.f32.mrb[0].mxu0
        %593 = vdwg.mxu0
        %594 = vmatprep.subr.mxu0 0.0
        %595 = vmatpush1.msra.mxu0 %v487
        %596 = vmatprep.subr.mxu0 0.0
        %597 = vmatpush1.msra.mxu0 %v488
        %598 = vmatprep.subr.mxu0 0.0
        %599 = vmatpush1.msra.mxu0 %v489
        %600 = vmatprep.subr.mxu0 0.0
        %601 = vmatpush1.msra.mxu0 %v490
        %602 = vmatprep.subr.mxu0 0.0
        %603 = vmatpush1.msra.mxu0 %v491
        %604 = vmatprep.subr.mxu0 0.0
        %605 = vmatpush1.msra.mxu0 %v492
        %606 = vmatprep.subr.mxu0 0.0
        %607 = vmatpush1.msra.mxu0 %v493
        %608 = vmatprep.subr.mxu0 0.0
        %609 = vmatpush1.msra.mxu0 %v494
        %610 = vmatprep.subr.mxu0 0.0
        %611 = vmatpush1.msra.mxu0 %v495
        %612 = vmatprep.subr.mxu0 0.0
        %613 = vmatpush1.msra.mxu0 %v496
        %614 = vmatprep.subr.mxu0 0.0
        %615 = vmatpush1.msra.mxu0 %v497
        %616 = vmatprep.subr.mxu0 0.0
        %617 = vmatpush1.msra.mxu0 %v498
        %618 = vmatprep.subr.mxu0 0.0
        %619 = vmatpush1.msra.mxu0 %v499
        %620 = vmatprep.subr.mxu0 0.0
        %621 = vmatpush1.msra.mxu0 %v500
        %622 = vmatprep.subr.mxu0 0.0
        %623 = vmatpush1.msra.mxu0 %v501
        %624 = vmatprep.subr.mxu0 0.0
        %625 = vmatpush1.msra.mxu0 %v502
        %626 = vmatprep.subr.mxu0 0.0
        %627 = vmatpush1.msra.mxu0 %v503
        %628 = vmatprep.subr.mxu0 0.0
        %629 = vmatpush1.msra.mxu0 %v504
        %630 = vmatprep.subr.mxu0 0.0
        %631 = vmatpush1.msra.mxu0 %v505
        %632 = vmatprep.subr.mxu0 0.0
        %633 = vmatpush1.msra.mxu0 %v506
        %634 = vmatprep.subr.mxu0 0.0
        %635 = vmatpush1.msra.mxu0 %v507
        %636 = vmatprep.subr.mxu0 0.0
        %637 = vmatpush1.msra.mxu0 %v508
        %638 = vmatprep.subr.mxu0 0.0
        %639 = vmatpush1.msra.mxu0 %v509
        %640 = vmatprep.subr.mxu0 0.0
        %641 = vmatpush1.msra.mxu0 %v510
        %642 = vmatprep.subr.mxu0 0.0
        %643 = vmatpush1.msra.mxu0 %v511
        %644 = vmatprep.subr.mxu0 0.0
        %645 = vmatpush1.msra.mxu0 %v512
        %646 = vmatprep.subr.mxu0 0.0
        %647 = vmatpush1.msra.mxu0 %v513
        %648 = vmatprep.subr.mxu0 0.0
        %649 = vmatpush1.msra.mxu0 %v514
        %650 = vmatprep.subr.mxu0 0.0
        %651 = vmatpush1.msra.mxu0 %v515
        %652 = vmatprep.subr.mxu0 0.0
        %653 = vmatpush1.msra.mxu0 %v516
        %654 = vmatprep.subr.mxu0 0.0
        %655 = vmatpush1.msra.mxu0 %v517
        %656 = vmatprep.subr.mxu0 0.0
        %657 = vmatpush1.msra.mxu0 %v518
        %658 = vmatprep.mubr.f32.mxu0 %v450
        %659 = vmatmul.mubr.f32.gmra.mrb[0].mxu0 %v449
        %v660 = vpop.f32.mrb[0].mxu0
        %v661 = vadd.f32 %v586, %v660
        %v662 = vpop.f32.mrb[0].mxu0
        %663 = vmatprep.mubr.f32.mxu0 %v454
        %664 = vmatmul.mubr.f32.gmra.mrb[0].mxu0 %v453
        %v665 = vpop.f32.mrb[0].mxu0
        %v666 = vadd.f32 %v591, %v665
        %v667 = vpop.f32.mrb[0].mxu0
        %668 = vdwg.mxu0
        %v669 = vld [vmem:[%s3] sm:$0xff]
        %v671 = vsel %vm233, %v669, 0
        %v674 = vsel %vm240, %v666, 0
        %676 = vmatprep.subr.mxu0 0.0
        %677 = vmatpush1.msra.mxu0 %v661
        %678 = vmatprep.subr.mxu0 0.0
        %679 = vmatpush1.msra.mxu0 %v674
        %680 = vmatprep.subr.mxu0 0.0
        %681 = vmatpush1.msra.mxu0 0.0
        %682 = vmatprep.subr.mxu0 0.0
        %683 = vmatpush1.msra.mxu0 0.0
        %684 = vmatprep.subr.mxu0 0.0
        %685 = vmatpush1.msra.mxu0 0.0
        %686 = vmatprep.subr.mxu0 0.0
        %687 = vmatpush1.msra.mxu0 0.0
        %688 = vmatprep.subr.mxu0 0.0
        %689 = vmatpush1.msra.mxu0 0.0
        %690 = vmatprep.subr.mxu0 0.0
        %691 = vmatpush1.msra.mxu0 0.0
        %692 = vmatprep.subr.mxu0 0.0
        %693 = vmatpush1.msra.mxu0 0.0
        %694 = vmatprep.subr.mxu0 0.0
        %695 = vmatpush1.msra.mxu0 0.0
        %696 = vmatprep.subr.mxu0 0.0
        %697 = vmatpush1.msra.mxu0 0.0
        %698 = vmatprep.subr.mxu0 0.0
        %699 = vmatpush1.msra.mxu0 0.0
        %700 = vmatprep.subr.mxu0 0.0
        %701 = vmatpush1.msra.mxu0 0.0
        %702 = vmatprep.subr.mxu0 0.0
        %703 = vmatpush1.msra.mxu0 0.0
        %704 = vmatprep.subr.mxu0 0.0
        %705 = vmatpush1.msra.mxu0 0.0
        %706 = vmatprep.subr.mxu0 0.0
        %707 = vmatpush1.msra.mxu0 0.0
        %708 = vmatprep.subr.mxu0 0.0
        %709 = vmatpush1.msra.mxu0 0.0
        %710 = vmatprep.subr.mxu0 0.0
        %711 = vmatpush1.msra.mxu0 0.0
        %712 = vmatprep.subr.mxu0 0.0
        %713 = vmatpush1.msra.mxu0 0.0
        %714 = vmatprep.subr.mxu0 0.0
        %715 = vmatpush1.msra.mxu0 0.0
        %716 = vmatprep.subr.mxu0 0.0
        %717 = vmatpush1.msra.mxu0 0.0
        %718 = vmatprep.subr.mxu0 0.0
        %719 = vmatpush1.msra.mxu0 0.0
        %720 = vmatprep.subr.mxu0 0.0
        %721 = vmatpush1.msra.mxu0 0.0
        %722 = vmatprep.subr.mxu0 0.0
        %723 = vmatpush1.msra.mxu0 0.0
        %724 = vmatprep.subr.mxu0 0.0
        %725 = vmatpush1.msra.mxu0 0.0
        %726 = vmatprep.subr.mxu0 0.0
        %727 = vmatpush1.msra.mxu0 0.0
        %728 = vmatprep.subr.mxu0 0.0
        %729 = vmatpush1.msra.mxu0 0.0
        %730 = vmatprep.subr.mxu0 0.0
        %731 = vmatpush1.msra.mxu0 0.0
        %732 = vmatprep.subr.mxu0 0.0
        %733 = vmatpush1.msra.mxu0 0.0
        %734 = vmatprep.subr.mxu0 0.0
        %735 = vmatpush1.msra.mxu0 0.0
        %736 = vmatprep.subr.mxu0 0.0
        %737 = vmatpush1.msra.mxu0 0.0
        %738 = vmatprep.subr.mxu0 0.0
        %739 = vmatpush1.msra.mxu0 0.0
        %740 = vmatprep.mubr.f32.mxu0 0.0
        %741 = vmatmul.mubr.f32.gmra.mrb[0].mxu0 %v671
        %v742 = vpop.f32.mrb[0].mxu0
        %v743 = vadd.f32 0.0, %v742
        %v744 = vpop.f32.mrb[0].mxu0
        %745 = vdwg.mxu0
        %vm746 = vcmp.gt.f32.partialorder %v743, 0.0
        %v747 = vmin.f32 %v743, 0.0
        %v748 = vmul.f32 %v747, 1.442695
        %v749 = vpow.pop %v748
        %v750 = vsub.f32 %v749, 1.0
        %v751 = vsel %vm746, %v743, %v750
        %v752 = vld [vmem:[%s4] sm:$0xff]
        %v753 = vld [vmem:[%s4 + $0x8] sm:$0xff]
        %v754 = vld [vmem:[%s4 + $0x10] sm:$0xff]
        %v755 = vld [vmem:[%s4 + $0x18] sm:$0xff]
        %v756 = vld [vmem:[%s4 + $0x20] sm:$0xff]
        %v757 = vld [vmem:[%s4 + $0x28] sm:$0xff]
        %v758 = vld [vmem:[%s4 + $0x30] sm:$0xff]
        %v759 = vld [vmem:[%s4 + $0x38] sm:$0xff]
        %vm760 = vcmask 523264
        %v762 = vsel %vm760, %v751, 0
        %764 = vmatprep.subr.mxu0 0.0
        %765 = vmatpush1.msra.mxu0 %v752
        %766 = vmatprep.subr.mxu0 0.0
        %767 = vmatpush1.msra.mxu0 %v753
        %768 = vmatprep.subr.mxu0 0.0
        %769 = vmatpush1.msra.mxu0 %v754
        %770 = vmatprep.subr.mxu0 0.0
        %771 = vmatpush1.msra.mxu0 %v755
        %772 = vmatprep.subr.mxu0 0.0
        %773 = vmatpush1.msra.mxu0 %v756
        %774 = vmatprep.subr.mxu0 0.0
        %775 = vmatpush1.msra.mxu0 %v757
        %776 = vmatprep.subr.mxu0 0.0
        %777 = vmatpush1.msra.mxu0 %v758
        %778 = vmatprep.subr.mxu0 0.0
        %779 = vmatpush1.msra.mxu0 %v759
        %780 = vmatprep.subr.mxu0 0.0
        %781 = vmatpush1.msra.mxu0 0.0
        %782 = vmatprep.subr.mxu0 0.0
        %783 = vmatpush1.msra.mxu0 0.0
        %784 = vmatprep.subr.mxu0 0.0
        %785 = vmatpush1.msra.mxu0 0.0
        %786 = vmatprep.subr.mxu0 0.0
        %787 = vmatpush1.msra.mxu0 0.0
        %788 = vmatprep.subr.mxu0 0.0
        %789 = vmatpush1.msra.mxu0 0.0
        %790 = vmatprep.subr.mxu0 0.0
        %791 = vmatpush1.msra.mxu0 0.0
        %792 = vmatprep.subr.mxu0 0.0
        %793 = vmatpush1.msra.mxu0 0.0
        %794 = vmatprep.subr.mxu0 0.0
        %795 = vmatpush1.msra.mxu0 0.0
        %796 = vmatprep.subr.mxu0 0.0
        %797 = vmatpush1.msra.mxu0 0.0
        %798 = vmatprep.subr.mxu0 0.0
        %799 = vmatpush1.msra.mxu0 0.0
        %800 = vmatprep.subr.mxu0 0.0
        %801 = vmatpush1.msra.mxu0 0.0
        %802 = vmatprep.subr.mxu0 0.0
        %803 = vmatpush1.msra.mxu0 0.0
        %804 = vmatprep.subr.mxu0 0.0
        %805 = vmatpush1.msra.mxu0 0.0
        %806 = vmatprep.subr.mxu0 0.0
        %807 = vmatpush1.msra.mxu0 0.0
        %808 = vmatprep.subr.mxu0 0.0
        %809 = vmatpush1.msra.mxu0 0.0
        %810 = vmatprep.subr.mxu0 0.0
        %811 = vmatpush1.msra.mxu0 0.0
        %812 = vmatprep.subr.mxu0 0.0
        %813 = vmatpush1.msra.mxu0 0.0
        %814 = vmatprep.subr.mxu0 0.0
        %815 = vmatpush1.msra.mxu0 0.0
        %816 = vmatprep.subr.mxu0 0.0
        %817 = vmatpush1.msra.mxu0 0.0
        %818 = vmatprep.subr.mxu0 0.0
        %819 = vmatpush1.msra.mxu0 0.0
        %820 = vmatprep.subr.mxu0 0.0
        %821 = vmatpush1.msra.mxu0 0.0
        %822 = vmatprep.subr.mxu0 0.0
        %823 = vmatpush1.msra.mxu0 0.0
        %824 = vmatprep.subr.mxu0 0.0
        %825 = vmatpush1.msra.mxu0 0.0
        %826 = vmatprep.subr.mxu0 0.0
        %827 = vmatpush1.msra.mxu0 0.0
        %828 = vmatprep.mubr.f32.mxu0 0.0
        %829 = vmatmul.mubr.f32.gmra.mrb[0].mxu0 %v762
        %v830 = vpop.f32.mrb[0].mxu0
        %v831 = vadd.f32 0.0, %v830
        %v832 = vpop.f32.mrb[0].mxu0
        %833 = vdwg.mxu0
        %vm834 = vcmask 64512
        %835 = vst.msk [vmem:[%s217] sm:$0xff] %vm834, %v831
        %s836 = sand.u32 %s137, 1
        %s837 = scalar_lea.sflag [#allocation3], %s836
        %s838 = sand.u32 %s137, 1
        %s839 = smul.addr %s838, 8
        %s840 = scalar_lea.vmem [#allocation2], %s839
        // Predicated region
        $region41: #{tpu_custom_call.1} parent=39 // pred_check
          %p841 = pneg %p147
        $region42: #{tpu_custom_call.1} parent=39 // pred_check_branch
          %843 = sbr.rel (%p841) target = $region44
        $region43: #{tpu_custom_call.1} parent=39 // pred_region
          %s845 = ssub.s32 128, 128
          %846 = vsyncadd %s837, %s845
          %s847 = smul.addr %s19, 128
          %s848 = scalar_lea.hbm %s5, %s847
          %s850 = sshll.u32 %s840, 4
          %s851 = int_to_ptr.vmem [resolvable:$true] %s850
          %853 = dma.vmem_to_hbm [thread:$0]  %s851, 128, %s848, %s837
        $region44: #{tpu_custom_call.1} parent=39 // pred_fallthru
          _
      $region40: #{tpu_custom_call.1} parent=5 // pred_fallthru
        _
      %p854 = scmp.le.s32.totalorder 2, %s14
      // Predicated region
      $region45: #{tpu_custom_call.1} parent=5 // pred_check
        %p855 = pneg %p854
      $region46: #{tpu_custom_call.1} parent=5 // pred_check_branch
        %857 = sbr.rel (%p855) target = $region48
      $region47: #{tpu_custom_call.1} parent=5 // pred_region
        %s858 = ssub.s32 %s14, 2
        // Predicated region
        $region49: #{tpu_custom_call.1} parent=47 // pred_check
          %p859 = pneg %p153
        $region50: #{tpu_custom_call.1} parent=47 // pred_check_branch
          %861 = sbr.rel (%p859) target = $region52
        $region51: #{tpu_custom_call.1} parent=47 // pred_region
          %s862 = sand.u32 %s138, 1
          %s863 = scalar_lea.sflag [#allocation3], %s862
          %s864 = sand.u32 %s138, 1
          %s865 = smul.addr %s864, 8
          %s866 = scalar_lea.vmem [#allocation2], %s865
          %867 = dma.done %s863, 128
        $region52: #{tpu_custom_call.1} parent=47 // pred_fallthru
          _
      $region48: #{tpu_custom_call.1} parent=5 // pred_fallthru
        _
    $region6: #{tpu_custom_call.1} parent=1 // loop_footer
      %s18 = sadd.s32 1, %s14
    $region7: #{tpu_custom_call.1} parent=1 // loop_footer_branch
      %13 = sbr.rel target = $region3
    $region8: #{tpu_custom_call.1} parent=1 // loop_exit
      _
    %868 = vsyncpa [#allocation3], 1
    %s869 = scalar_lea.sflag [#allocation3], 1
    %870 = vsyncpa %s869, 1

</llo_original>
